<compile_context>
chip_gen: v6e
topology: v6e:2x2x1
jax: 0.10.0
libtpu: 0.0.40
codegen_flags: <defaults>
</compile_context>

<pallas_src>
import jax
import jax.numpy as jnp
import numpy as np
from jax import lax
from jax.experimental import pallas as pl
from jax.experimental.pallas import tpu as pltpu


def _round_up(x: int, m: int) -> int:
    return ((x + m - 1) // m) * m


def _make_kernel(margin: float, n_valid: int, block_rows: int,
                 num_blocks: int, acc_width: int):
    T = block_rows
    G = num_blocks
    W = acc_width
    n_total = T * G           # padded number of rows
    num_slices = T // W       # static lane-slice count for the accumulator

    def kernel(xi_ref, xj_ref, ni_ref, nj_ref, li_ref, lj_ref, out_ref):
        bi = pl.program_id(0)          # row block ("parallel")
        s = pl.program_id(1)           # round-robin shift ("arbitrary")
        bj = (bi + s) % G              # column block

        @pl.when(s == 0)
        def _init():
            out_ref[...] = jnp.zeros_like(out_ref)

        # Antipodal duplicates (G even, s == G/2, bi >= G/2) select nothing:
        # skip their MXU + VPU plane entirely.
        is_live = jnp.logical_not(jnp.logical_and(2 * s == G, bi >= G // 2))

        @pl.when(is_live)
        def _compute():
            # Gram matrix on the MXU: bf16 inputs, f32 accumulation.
            gram = lax.dot_general(
                xi_ref[...], xj_ref[...], (((1,), (1,)), ((), ())),
                preferred_element_type=jnp.float32)                 # (T, T)

            # Precomputed norms: (T,1) + (1,T) broadcast, no transposes.
            d2 = jnp.maximum(ni_ref[...] + nj_ref[...] - 2.0 * gram, 0.0)

            # Pair selection from cheap (T,1)/(1,T) iotas; compares broadcast.
            row_ids = bi * T + lax.broadcasted_iota(jnp.int32, (T, 1), 0)
            col_ids = bj * T + lax.broadcasted_iota(jnp.int32, (1, T), 1)
            #   diagonal tiles (s == 0) and live antipodal tiles keep i < j;
            #   every other visited tile is the unique visit of its unordered
            #   block pair, so keep every valid element.
            need_lt = jnp.logical_or(s == 0, 2 * s == G)
            col_shift = jnp.where(need_lt, 0, n_total).astype(jnp.int32)
            pair_ok = row_ids < (col_ids + col_shift)                # (T, T)
            valid = jnp.logical_and(row_ids < n_valid, col_ids < n_valid)
            sel = jnp.logical_and(pair_ok, valid)

            # int32 label compare (exact), (T,1)==(1,T) -> (T,T) broadcast.
            same = li_ref[...] == lj_ref[...]

            # positives: d2 ; negatives: relu(margin - sqrt(d2))^2
            # TODO(synk): forward-only; use sqrt(d2 + eps) if a VJP is added.
            hinge = jnp.maximum(jnp.float32(margin) - jnp.sqrt(d2), 0.0)
            per_pair = jnp.where(same, d2, hinge * hinge)
            vals = jnp.where(sel, per_pair, 0.0)

            # Lane-dense accumulation: fold (T,T) -> (T,W) with static VPU
            # adds; the resident output block stays lane-dense.
            acc = vals[:, 0:W]
            for k in range(1, num_slices):
                acc = acc + vals[:, k * W:(k + 1) * W]
            out_ref[...] += acc

    return kernel


def online_contrastive_loss(embeddings, labels, margin=1.0, block_rows=512):
    """Pallas TPU implementation of OnlineContrastiveLoss.forward.

    Uses the canonical all-pairs selector: every (i < j) pair with equal
    labels is a positive pair, every (i < j) pair with different labels is a
    negative pair.
    # TODO(synk): arbitrary user-supplied pair_selector objects (data-dependent,
    # variable-length pair index lists) have no clean Pallas equivalent.
    """
    embeddings = jnp.asarray(embeddings)
    labels = jnp.asarray(labels, jnp.int32)
    n, d = embeddings.shape

    # ---- Tile-size selection -------------------------------------------------
    block_rows = max(128, _round_up(int(block_rows), 128))
    n16 = _round_up(max(n, 1), 16)
    if n16 <= 128:
        # Single tile: the (1, T) column blocks equal the full array dims,
        # so any 16-multiple T is a legal block shape.
        T = n16
    else:
        # Multi-block path: T must be a multiple of 128 so the lane-tiled
        # (1, T) column-side blocks satisfy the (8, 128) constraint.
        T = min(block_rows, _round_up(n16, 128))
        # v7x megacore: keep >= 2 blocks on the 'parallel' row axis.
        if _round_up(n, T) // T < 2:
            T = max(128, _round_up((n16 + 1) // 2, 128))
    n_pad = _round_up(n, T)
    G = n_pad // T
    S = G // 2 + 1                       # round-robin shifts cover every pair
    W = 128 if T % 128 == 0 else T       # lane-dense accumulator width
    d_pad = _round_up(d, 128)            # native (16,128) tiling, full-lane K

    # ---- Operand preparation (device-side only; jit friendly) ----------------
    emb = embeddings.astype(jnp.bfloat16)
    if d_pad != d:
        emb = jnp.pad(emb, ((0, 0), (0, d_pad - d)))
    if n_pad != n:
        emb = jnp.pad(emb, ((0, n_pad - n), (0, 0)))
        labels = jnp.pad(labels, (0, n_pad - n), constant_values=-1)
    # Norms from the bf16-cast embeddings so d2 is consistent with the gram.
    norms = jnp.sum(emb.astype(jnp.float32) ** 2, axis=1, keepdims=True)
    norm_row = norms                        # (n_pad, 1) f32
    norm_col = norms.reshape(1, n_pad)      # (1, n_pad) f32
    lab_row = labels.reshape(n_pad, 1)      # (n_pad, 1) i32
    lab_col = labels.reshape(1, n_pad)      # (1, n_pad) i32

    kernel = _make_kernel(float(margin), n, T, G, W)

    row_map = lambda bi, s: (bi, 0)
    col_map = lambda bi, s: ((bi + s) % G, 0)
    col_map_t = lambda bi, s: (0, (bi + s) % G)

    # Explicit VMEM budget (double-buffered inputs + resident accumulator).
    block_bytes = (2 * T * d_pad * 2        # two bf16 embedding blocks
                   + 4 * T * 4              # ni, nj, li, lj
                   + T * W * 4)             # accumulator block
    vmem_limit = int(min(100 << 20, max(32 << 20, 4 * block_bytes + (4 << 20))))

    partial = pl.pallas_call(
        kernel,
        out_shape=jax.ShapeDtypeStruct((n_pad, W), jnp.float32),
        grid_spec=pltpu.PrefetchScalarGridSpec(
            num_scalar_prefetch=0,
            grid=(G, S),
            in_specs=[
                pl.BlockSpec((T, d_pad), row_map),   # embeddings, row block
                pl.BlockSpec((T, d_pad), col_map),   # embeddings, col block
                pl.BlockSpec((T, 1), row_map),       # row norms
                pl.BlockSpec((1, T), col_map_t),     # col norms
                pl.BlockSpec((T, 1), row_map),       # row labels (i32)
                pl.BlockSpec((1, T), col_map_t),     # col labels (i32)
            ],
            out_specs=pl.BlockSpec((T, W), row_map),
        ),
        compiler_params=pltpu.CompilerParams(
            dimension_semantics=("parallel", "arbitrary"),
            vmem_limit_bytes=vmem_limit),
    )(emb, emb, norm_row, norm_col, lab_row, lab_col)

    # Every (i < j) pair is either positive or negative, so the mean's
    # denominator is a deterministic function of n; final reduce + divide here.
    count = max(n * (n - 1) // 2, 1)
    return jnp.sum(partial) / jnp.float32(count)


def _reference_loss(embeddings, labels, margin):
    """Vectorized numpy reference mirroring the PyTorch module (all-pairs)."""
    emb = np.asarray(embeddings, np.float32)
    labels = np.asarray(labels)
    n = emb.shape[0]
    d2 = ((emb[:, None, :] - emb[None, :, :]) ** 2).sum(-1)
    iu = np.triu_indices(n, k=1)
    d2u = d2[iu]
    same = (labels[:, None] == labels[None, :])[iu]
    pos = d2u[same]
    neg = np.maximum(margin - np.sqrt(d2u[~same]), 0.0) ** 2
    return float(np.concatenate([pos, neg]).mean())


if __name__ == "__main__":
    key = jax.random.PRNGKey(0)
    k1, k2, k3 = jax.random.split(key, 3)

    # Test 1: single-tile path (N=8, D=32; D padded to 128 in the wrapper).
    emb1 = jax.random.normal(k1, (8, 32), dtype=jnp.float32)
    lab1 = jnp.array([0, 1, 0, 1, 0, 1, 0, 1], dtype=jnp.int32)
    loss1 = jax.block_until_ready(online_contrastive_loss(emb1, lab1, margin=1.0))
    # Reference on bf16-rounded inputs (matches the kernel's MXU feed).
    emb1_bf = np.asarray(emb1.astype(jnp.bfloat16).astype(jnp.float32))
    ref1 = _reference_loss(emb1_bf, np.asarray(lab1), 1.0)
    assert np.allclose(float(loss1), ref1, rtol=3e-2, atol=3e-3), (float(loss1), ref1)

    # Test 2: multi-block round-robin + row/col padding path
    # (N=300, D=40 -> T=128, G=3, S=2, D padded to 128), margin large enough
    # that negative pairs contribute.
    emb2 = jax.random.normal(k2, (300, 40), dtype=jnp.float32)
    lab2 = jax.random.randint(k3, (300,), 0, 3, dtype=jnp.int32)
    loss2 = jax.block_until_ready(
        online_contrastive_loss(emb2, lab2, margin=10.0, block_rows=128))
    emb2_bf = np.asarray(emb2.astype(jnp.bfloat16).astype(jnp.float32))
    ref2 = _reference_loss(emb2_bf, np.asarray(lab2), 10.0)
    assert np.allclose(float(loss2), ref2, rtol=3e-2, atol=3e-3), (float(loss2), ref2)

    print("KERNEL_OK")
</pallas_src>

<mosaic_0001>
module attributes {stable_mosaic.version = 11 : i64} {
  func.func @kernel(%arg0: i32, %arg1: i32, %arg2: memref<16x128xbf16, #tpu.memory_space<vmem>>, %arg3: memref<16x128xbf16, #tpu.memory_space<vmem>>, %arg4: memref<16x1xf32, #tpu.memory_space<vmem>>, %arg5: memref<1x16xf32, #tpu.memory_space<vmem>>, %arg6: memref<16x1xi32, #tpu.memory_space<vmem>>, %arg7: memref<1x16xi32, #tpu.memory_space<vmem>>, %arg8: memref<16x16xf32, #tpu.memory_space<vmem>>) attributes {dimension_semantics = [#tpu.dimension_semantics<parallel>, #tpu.dimension_semantics<arbitrary>], iteration_bounds = array<i64: 1, 1>, scalar_prefetch = 0 : i64, scratch_operands = 0 : i64, tpu.core_type = #tpu.core_type<tc>, window_params = [{transform_indices = @transform_0, window_bounds = array<i64: 16, 128>}, {transform_indices = @transform_1, window_bounds = array<i64: 16, 128>}, {transform_indices = @transform_2, window_bounds = array<i64: 16, 1>}, {transform_indices = @transform_3, window_bounds = array<i64: 1, 16>}, {transform_indices = @transform_4, window_bounds = array<i64: 16, 1>}, {transform_indices = @transform_5, window_bounds = array<i64: 1, 16>}, {transform_indices = @transform_6, window_bounds = array<i64: 16, 16>}]} {
    %0 = arith.addi %arg0, %arg1 : i32
    %c1_i32 = arith.constant 1 : i32
    %c0_i32 = arith.constant 0 : i32
    %1 = arith.cmpi eq, %c1_i32, %c0_i32 : i32
    %c1_i32_0 = arith.constant 1 : i32
    %2 = arith.select %1, %c1_i32_0, %c1_i32 : i32
    %3 = arith.remsi %0, %2 : i32
    %c0_i32_1 = arith.constant 0 : i32
    %4 = arith.cmpi ne, %3, %c0_i32_1 : i32
    %c0_i32_2 = arith.constant 0 : i32
    %5 = arith.cmpi slt, %3, %c0_i32_2 : i32
    %c0_i32_3 = arith.constant 0 : i32
    %6 = arith.cmpi slt, %2, %c0_i32_3 : i32
    %7 = arith.xori %5, %6 : i1
    %8 = arith.andi %7, %4 : i1
    %9 = arith.addi %3, %2 : i32
    %10 = arith.select %8, %9, %3 : i32
    %c0_i32_4 = arith.constant 0 : i32
    %11 = arith.cmpi eq, %arg1, %c0_i32_4 : i32
    %12 = arith.extui %11 : i1 to i32
    %c0_i32_5 = arith.constant 0 : i32
    %13 = arith.cmpi ne, %12, %c0_i32_5 : i32
    scf.if %13 {
      %cst = arith.constant 0.000000e+00 : f32
      %21 = vector.broadcast %cst : f32 to vector<16x16xf32>
      %c0 = arith.constant 0 : index
      %c0_9 = arith.constant 0 : index
      %22 = vector.load %arg8[%c0, %c0_9] : memref<16x16xf32, #tpu.memory_space<vmem>>, vector<16x16xf32>
      tpu.vector_store %arg8[%c0, %c0_9], %21 {strides = array<i32>} : memref<16x16xf32, #tpu.memory_space<vmem>>, vector<16x16xf32>,
    } else {
    }
    %c2_i32 = arith.constant 2 : i32
    %14 = arith.muli %c2_i32, %arg1 : i32
    %c1_i32_6 = arith.constant 1 : i32
    %15 = arith.cmpi eq, %14, %c1_i32_6 : i32
    %c0_i32_7 = arith.constant 0 : i32
    %16 = arith.cmpi sge, %arg0, %c0_i32_7 : i32
    %17 = arith.andi %15, %16 : i1
    %true = arith.constant true
    %18 = arith.xori %17, %true : i1
    %19 = arith.extui %18 : i1 to i32
    %c0_i32_8 = arith.constant 0 : i32
    %20 = arith.cmpi ne, %19, %c0_i32_8 : i32
    scf.if %20 {
      %c0 = arith.constant 0 : index
      %c0_9 = arith.constant 0 : index
      %21 = vector.load %arg2[%c0, %c0_9] : memref<16x128xbf16, #tpu.memory_space<vmem>>, vector<16x128xbf16>
      %c0_10 = arith.constant 0 : index
      %c0_11 = arith.constant 0 : index
      %22 = vector.load %arg3[%c0_10, %c0_11] : memref<16x128xbf16, #tpu.memory_space<vmem>>, vector<16x128xbf16>
      %cst = arith.constant dense<0.000000e+00> : vector<16x16xf32>
      %23 = tpu.matmul %21, %22, %cst {dimension_numbers = #tpu.dot_dimension_numbers<[1], [1], [0], [0], [0, 0, 1, 0], [], []>} : vector<16x128xbf16>, vector<16x128xbf16>, vector<16x16xf32> -> vector<16x16xf32>
      %c0_12 = arith.constant 0 : index
      %c0_13 = arith.constant 0 : index
      %24 = vector.load %arg4[%c0_12, %c0_13] : memref<16x1xf32, #tpu.memory_space<vmem>>, vector<16x1xf32>
      %c0_14 = arith.constant 0 : index
      %c0_15 = arith.constant 0 : index
      %25 = vector.load %arg5[%c0_14, %c0_15] : memref<1x16xf32, #tpu.memory_space<vmem>>, vector<1x16xf32>
      %26 = vector.broadcast %24 : vector<16x1xf32> to vector<16x16xf32>
      %27 = vector.broadcast %25 : vector<1x16xf32> to vector<16x16xf32>
      %28 = arith.addf %26, %27 : vector<16x16xf32>
      %cst_16 = arith.constant 2.000000e+00 : f32
      %29 = vector.broadcast %cst_16 : f32 to vector<16x16xf32>
      %30 = arith.mulf %29, %23 : vector<16x16xf32>
      %31 = arith.subf %28, %30 : vector<16x16xf32>
      %cst_17 = arith.constant 0.000000e+00 : f32
      %32 = vector.broadcast %cst_17 : f32 to vector<16x16xf32>
      %33 = arith.maximumf %31, %32 : vector<16x16xf32>
      %c16_i32 = arith.constant 16 : i32
      %34 = arith.muli %arg0, %c16_i32 : i32
      %35 = tpu.iota {dimensions = array<i32: 0>} : vector<16x1xi32>
      %36 = vector.broadcast %34 : i32 to vector<16x1xi32>
      %37 = arith.addi %36, %35 : vector<16x1xi32>
      %c16_i32_18 = arith.constant 16 : i32
      %38 = arith.muli %10, %c16_i32_18 : i32
      %39 = tpu.iota {dimensions = array<i32: 1>} : vector<1x16xi32>
      %40 = vector.broadcast %38 : i32 to vector<1x16xi32>
      %41 = arith.addi %40, %39 : vector<1x16xi32>
      %c0_i32_19 = arith.constant 0 : i32
      %42 = arith.cmpi eq, %arg1, %c0_i32_19 : i32
      %c2_i32_20 = arith.constant 2 : i32
      %43 = arith.muli %c2_i32_20, %arg1 : i32
      %c1_i32_21 = arith.constant 1 : i32
      %44 = arith.cmpi eq, %43, %c1_i32_21 : i32
      %45 = arith.ori %42, %44 : i1
      %c0_i32_22 = arith.constant 0 : i32
      %c16_i32_23 = arith.constant 16 : i32
      %46 = arith.select %45, %c0_i32_22, %c16_i32_23 : i32
      %47 = vector.broadcast %46 : i32 to vector<1x16xi32>
      %48 = arith.addi %41, %47 : vector<1x16xi32>
      %49 = vector.broadcast %37 : vector<16x1xi32> to vector<16x16xi32>
      %50 = vector.broadcast %48 : vector<1x16xi32> to vector<16x16xi32>
      %51 = arith.cmpi slt, %49, %50 : vector<16x16xi32>
      %c8_i32 = arith.constant 8 : i32
      %52 = vector.broadcast %c8_i32 : i32 to vector<16x1xi32>
      %53 = arith.cmpi slt, %37, %52 : vector<16x1xi32>
      %c8_i32_24 = arith.constant 8 : i32
      %54 = vector.broadcast %c8_i32_24 : i32 to vector<1x16xi32>
      %55 = arith.cmpi slt, %41, %54 : vector<1x16xi32>
      %56 = vector.broadcast %53 : vector<16x1xi1> to vector<16x16xi1>
      %57 = vector.broadcast %55 : vector<1x16xi1> to vector<16x16xi1>
      %58 = arith.andi %56, %57 : vector<16x16xi1>
      %59 = arith.andi %51, %58 : vector<16x16xi1>
      %c0_25 = arith.constant 0 : index
      %c0_26 = arith.constant 0 : index
      %60 = vector.load %arg6[%c0_25, %c0_26] : memref<16x1xi32, #tpu.memory_space<vmem>>, vector<16x1xi32>
      %c0_27 = arith.constant 0 : index
      %c0_28 = arith.constant 0 : index
      %61 = vector.load %arg7[%c0_27, %c0_28] : memref<1x16xi32, #tpu.memory_space<vmem>>, vector<1x16xi32>
      %62 = vector.broadcast %60 : vector<16x1xi32> to vector<16x16xi32>
      %63 = vector.broadcast %61 : vector<1x16xi32> to vector<16x16xi32>
      %64 = arith.cmpi eq, %62, %63 : vector<16x16xi32>
      %65 = math.sqrt %33 : vector<16x16xf32>
      %cst_29 = arith.constant 1.000000e+00 : f32
      %66 = vector.broadcast %cst_29 : f32 to vector<16x16xf32>
      %67 = arith.subf %66, %65 : vector<16x16xf32>
      %cst_30 = arith.constant 0.000000e+00 : f32
      %68 = vector.broadcast %cst_30 : f32 to vector<16x16xf32>
      %69 = arith.maximumf %67, %68 : vector<16x16xf32>
      %70 = arith.mulf %69, %69 : vector<16x16xf32>
      %71 = arith.select %64, %33, %70 : vector<16x16xi1>, vector<16x16xf32>
      %cst_31 = arith.constant 0.000000e+00 : f32
      %72 = vector.broadcast %cst_31 : f32 to vector<16x16xf32>
      %73 = arith.select %59, %71, %72 : vector<16x16xi1>, vector<16x16xf32>
      %c0_32 = arith.constant 0 : index
      %c0_33 = arith.constant 0 : index
      %74 = vector.load %arg8[%c0_32, %c0_33] : memref<16x16xf32, #tpu.memory_space<vmem>>, vector<16x16xf32>
      %75 = arith.addf %74, %73 : vector<16x16xf32>
      %c0_34 = arith.constant 0 : index
      %c0_35 = arith.constant 0 : index
      %76 = vector.load %arg8[%c0_34, %c0_35] : memref<16x16xf32, #tpu.memory_space<vmem>>, vector<16x16xf32>
      tpu.vector_store %arg8[%c0_34, %c0_35], %75 {strides = array<i32>} : memref<16x16xf32, #tpu.memory_space<vmem>>, vector<16x16xf32>,
    } else {
    }
    return
  }
  func.func @transform_0(%arg0: i32, %arg1: i32) -> (i32, i32) {
    %c0_i32 = arith.constant 0 : i32
    %c0_i32_0 = arith.constant 0 : i32
    return %arg0, %c0_i32 : i32, i32
  }
  func.func @transform_1(%arg0: i32, %arg1: i32) -> (i32, i32) {
    %0 = arith.addi %arg0, %arg1 : i32
    %c1_i32 = arith.constant 1 : i32
    %c0_i32 = arith.constant 0 : i32
    %1 = arith.cmpi eq, %c1_i32, %c0_i32 : i32
    %c1_i32_0 = arith.constant 1 : i32
    %2 = arith.select %1, %c1_i32_0, %c1_i32 : i32
    %3 = arith.remsi %0, %2 : i32
    %c0_i32_1 = arith.constant 0 : i32
    %4 = arith.cmpi ne, %3, %c0_i32_1 : i32
    %c0_i32_2 = arith.constant 0 : i32
    %5 = arith.cmpi slt, %3, %c0_i32_2 : i32
    %c0_i32_3 = arith.constant 0 : i32
    %6 = arith.cmpi slt, %2, %c0_i32_3 : i32
    %7 = arith.xori %5, %6 : i1
    %8 = arith.andi %7, %4 : i1
    %9 = arith.addi %3, %2 : i32
    %10 = arith.select %8, %9, %3 : i32
    %c0_i32_4 = arith.constant 0 : i32
    %c0_i32_5 = arith.constant 0 : i32
    return %10, %c0_i32_4 : i32, i32
  }
  func.func @transform_2(%arg0: i32, %arg1: i32) -> (i32, i32) {
    %c0_i32 = arith.constant 0 : i32
    %c0_i32_0 = arith.constant 0 : i32
    return %arg0, %c0_i32 : i32, i32
  }
  func.func @transform_3(%arg0: i32, %arg1: i32) -> (i32, i32) {
    %0 = arith.addi %arg0, %arg1 : i32
    %c1_i32 = arith.constant 1 : i32
    %c0_i32 = arith.constant 0 : i32
    %1 = arith.cmpi eq, %c1_i32, %c0_i32 : i32
    %c1_i32_0 = arith.constant 1 : i32
    %2 = arith.select %1, %c1_i32_0, %c1_i32 : i32
    %3 = arith.remsi %0, %2 : i32
    %c0_i32_1 = arith.constant 0 : i32
    %4 = arith.cmpi ne, %3, %c0_i32_1 : i32
    %c0_i32_2 = arith.constant 0 : i32
    %5 = arith.cmpi slt, %3, %c0_i32_2 : i32
    %c0_i32_3 = arith.constant 0 : i32
    %6 = arith.cmpi slt, %2, %c0_i32_3 : i32
    %7 = arith.xori %5, %6 : i1
    %8 = arith.andi %7, %4 : i1
    %9 = arith.addi %3, %2 : i32
    %10 = arith.select %8, %9, %3 : i32
    %c0_i32_4 = arith.constant 0 : i32
    %c0_i32_5 = arith.constant 0 : i32
    return %c0_i32_4, %10 : i32, i32
  }
  func.func @transform_4(%arg0: i32, %arg1: i32) -> (i32, i32) {
    %c0_i32 = arith.constant 0 : i32
    %c0_i32_0 = arith.constant 0 : i32
    return %arg0, %c0_i32 : i32, i32
  }
  func.func @transform_5(%arg0: i32, %arg1: i32) -> (i32, i32) {
    %0 = arith.addi %arg0, %arg1 : i32
    %c1_i32 = arith.constant 1 : i32
    %c0_i32 = arith.constant 0 : i32
    %1 = arith.cmpi eq, %c1_i32, %c0_i32 : i32
    %c1_i32_0 = arith.constant 1 : i32
    %2 = arith.select %1, %c1_i32_0, %c1_i32 : i32
    %3 = arith.remsi %0, %2 : i32
    %c0_i32_1 = arith.constant 0 : i32
    %4 = arith.cmpi ne, %3, %c0_i32_1 : i32
    %c0_i32_2 = arith.constant 0 : i32
    %5 = arith.cmpi slt, %3, %c0_i32_2 : i32
    %c0_i32_3 = arith.constant 0 : i32
    %6 = arith.cmpi slt, %2, %c0_i32_3 : i32
    %7 = arith.xori %5, %6 : i1
    %8 = arith.andi %7, %4 : i1
    %9 = arith.addi %3, %2 : i32
    %10 = arith.select %8, %9, %3 : i32
    %c0_i32_4 = arith.constant 0 : i32
    %c0_i32_5 = arith.constant 0 : i32
    return %c0_i32_4, %10 : i32, i32
  }
  func.func @transform_6(%arg0: i32, %arg1: i32) -> (i32, i32) {
    %c0_i32 = arith.constant 0 : i32
    %c0_i32_0 = arith.constant 0 : i32
    return %arg0, %c0_i32 : i32, i32
  }
}

</mosaic_0001>

<llo_original>
// kernel: tpu_custom_call.1
$region0: #{tpu_custom_call.1}
  #allocation0 [shape = 'u32[]', space=smem, size = 0x4, offset = 0x4, fixed_abs, tag = 'smem constant byte address 0x4 - core index']
  #allocation1 [shape = 'u32[144,128]{1,0:T(1,128)}', space=vmem, size = 0x12000, scoped, tag = 'internal scratch']
  %s0 = inlined_call_operand.vmem [shape: bf16[16,128], index: 0, kind: input, shape index: {}]
  %s1 = inlined_call_operand.vmem [shape: bf16[16,128], index: 1, kind: input, shape index: {}]
  %s2 = inlined_call_operand.vmem [shape: f32[16,1], index: 2, kind: input, shape index: {}]
  %s3 = inlined_call_operand.vmem [shape: f32[1,16], index: 3, kind: input, shape index: {}]
  %s4 = inlined_call_operand.vmem [shape: s32[16,1], index: 4, kind: input, shape index: {}]
  %s5 = inlined_call_operand.vmem [shape: s32[1,16], index: 5, kind: input, shape index: {}]
  %s6 = inlined_call_operand.hbm [shape: f32[16,16], index: 6, kind: output, shape index: {}]
  %s7 = sld [smem:[#allocation0]]
  $region42: #{tpu_custom_call.1} parent=0
    _
  %s9 = ssub.s32 1, %s7
  %s10 = scalar_select 0, %s9, %s7
  $region1: #{tpu_custom_call.1} parent=0
    #allocation2 [shape = 'u8[8192]{0}', space=vmem, size = 0x2000, scoped, tag = 'output window, operand 0, single buffered']
    #allocation3 [shape = 's32[1]{0}', space=sflag, size = 0x4, scoped, tag = 'scoped memory for tpu_custom_call.1']
    %11 = vsyncpa [#allocation3], 0
    // Predicated region
    $region2: #{tpu_custom_call.1} parent=1 // pred_check
      _
    $region3: #{tpu_custom_call.1} parent=1 // pred_check_branch
      %13 = sbr.rel (0) target = $region5
    $region4: #{tpu_custom_call.1} parent=1 // pred_region
      _
    $region5: #{tpu_custom_call.1} parent=1 // pred_fallthru
      _
    // Predicated region
    $region6: #{tpu_custom_call.1} parent=1 // pred_check
      _
    $region7: #{tpu_custom_call.1} parent=1 // pred_check_branch
      %15 = sbr.rel (0) target = $region9
    $region8: #{tpu_custom_call.1} parent=1 // pred_region
      _
    $region9: #{tpu_custom_call.1} parent=1 // pred_fallthru
      _
    // Predicated region
    $region10: #{tpu_custom_call.1} parent=1 // pred_check
      _
    $region11: #{tpu_custom_call.1} parent=1 // pred_check_branch
      %17 = sbr.rel (0) target = $region13
    $region12: #{tpu_custom_call.1} parent=1 // pred_region
      _
    $region13: #{tpu_custom_call.1} parent=1 // pred_fallthru
      _
    // Predicated region
    $region14: #{tpu_custom_call.1} parent=1 // pred_check
      _
    $region15: #{tpu_custom_call.1} parent=1 // pred_check_branch
      %19 = sbr.rel (0) target = $region17
    $region16: #{tpu_custom_call.1} parent=1 // pred_region
      _
    $region17: #{tpu_custom_call.1} parent=1 // pred_fallthru
      _
    // Predicated region
    $region18: #{tpu_custom_call.1} parent=1 // pred_check
      _
    $region19: #{tpu_custom_call.1} parent=1 // pred_check_branch
      %21 = sbr.rel (0) target = $region21
    $region20: #{tpu_custom_call.1} parent=1 // pred_region
      _
    $region21: #{tpu_custom_call.1} parent=1 // pred_fallthru
      _
    // Predicated region
    $region22: #{tpu_custom_call.1} parent=1 // pred_check
      _
    $region23: #{tpu_custom_call.1} parent=1 // pred_check_branch
      %23 = sbr.rel (0) target = $region25
    $region24: #{tpu_custom_call.1} parent=1 // pred_region
      _
    $region25: #{tpu_custom_call.1} parent=1 // pred_fallthru
      _
    %p25 = scmp.eq.s32.totalorder 0, 0
    // Predicated region
    $region26: #{tpu_custom_call.1} parent=1 // pred_check
      %p26 = pneg %p25
    $region27: #{tpu_custom_call.1} parent=1 // pred_check_branch
      %28 = sbr.rel (%p26) target = $region29
    $region28: #{tpu_custom_call.1} parent=1 // pred_region
      %vm29 = vcmask 130048
      %30 = vst.msk [vmem:[#allocation2] sm:$0xff] %vm29, 0.0
      %31 = vst.msk [vmem:[#allocation2 + $0x8] sm:$0xff] %vm29, 0.0
    $region29: #{tpu_custom_call.1} parent=1 // pred_fallthru
      _
    %s32 = smul.u32 0, 2
    %p33 = scmp.eq.s32.totalorder %s32, 1
    %p34 = scmp.ge.s32.totalorder 0, 0
    %p35 = pnand %p33, %p34
    %p36 = pneg %p35
    %p37 = pneg %p36
    // Predicated region
    $region30: #{tpu_custom_call.1} parent=1 // pred_check
      _
    $region31: #{tpu_custom_call.1} parent=1 // pred_check_branch
      %39 = sbr.rel (%p36) target = $region33
    $region32: #{tpu_custom_call.1} parent=1 // pred_region
      %v40 = vld [vmem:[%s0] sm:$0xf]
      %v41 = vld [vmem:[%s0 + $0x4] sm:$0xf]
      %v42 = vld [vmem:[%s1] sm:$0xf]
      %v43 = vld [vmem:[%s1 + $0x4] sm:$0xf]
      %v46 = vunpack.c.l.b16 %v40
      %v47 = vunpack.c.l.b16 %v41
      %v48 = vpack.c.b16 %v47, %v46
      %v52 = vunpack.c.l.b16 %v42
      %v53 = vunpack.c.l.b16 %v43
      %v54 = vpack.c.b16 %v53, %v52
      %56 = vmatprep.subr.bf16.mxu0 0
      %57 = vmatpush1.bf16.xpose.msra.mxu0 0
      %58 = vmatprep.subr.bf16.mxu0 0
      %59 = vmatpush1.bf16.xpose.msra.mxu0 0
      %60 = vmatprep.subr.bf16.mxu0 0
      %61 = vmatpush1.bf16.xpose.msra.mxu0 0
      %62 = vmatprep.subr.bf16.mxu0 0
      %63 = vmatpush1.bf16.xpose.msra.mxu0 0
      %64 = vmatprep.subr.bf16.mxu0 0
      %65 = vmatpush1.bf16.xpose.msra.mxu0 0
      %66 = vmatprep.subr.bf16.mxu0 0
      %67 = vmatpush1.bf16.xpose.msra.mxu0 0
      %68 = vmatprep.subr.bf16.mxu0 0
      %69 = vmatpush1.bf16.xpose.msra.mxu0 0
      %70 = vmatprep.subr.bf16.mxu0 0
      %71 = vmatpush1.bf16.xpose.msra.mxu0 %v54
      %72 = vmatprep.subr.bf16.mxu0 0
      %73 = vmatpush2.bf16.xpose.msra.mxu0 0
      %74 = vmatprep.subr.bf16.mxu0 0
      %75 = vmatpush2.bf16.xpose.msra.mxu0 0
      %76 = vmatprep.subr.bf16.mxu0 0
      %77 = vmatpush2.bf16.xpose.msra.mxu0 0
      %78 = vmatprep.subr.bf16.mxu0 0
      %79 = vmatpush2.bf16.xpose.msra.mxu0 0
      %80 = vmatprep.subr.bf16.mxu0 0
      %81 = vmatpush2.bf16.xpose.msra.mxu0 0
      %82 = vmatprep.subr.bf16.mxu0 0
      %83 = vmatpush2.bf16.xpose.msra.mxu0 0
      %84 = vmatprep.subr.bf16.mxu0 0
      %85 = vmatpush2.bf16.xpose.msra.mxu0 0
      %86 = vmatprep.subr.bf16.mxu0 0
      %87 = vmatpush2.bf16.xpose.msra.mxu0 0
      %88 = vmatprep.mubr.bf16.mxu0 0
      %89 = vmatmul.mubr.bf16.gmra.mxu0 %v48
      %v90 = vpop.f32.mrf.mxu0
      %v91 = vadd.f32 0.0, %v90
      %v92 = vpop.f32.mrf.mxu0
      %v93 = vpop.f32.mrf.mxu0
      %v94 = vadd.f32 0.0, %v93
      %v95 = vpop.f32.mrf.mxu0
      %96 = vdwg.mxu0
      %v97 = vld [vmem:[%s2] sm:$0xff]
      %v98 = vld [vmem:[%s2 + $0x8] sm:$0xff]
      %v99 = vld [vmem:[%s3] sm:$0x1]
      %101 = vset.pattern.permute.xlu0 0
      %102 = vperm.xlu0 %101, %v97
      %v103 = vpop.permute.xlu0 %102
      %106 = vset.pattern.permute.xlu0 0
      %107 = vperm.xlu0 %106, %v98
      %v108 = vpop.permute.xlu0 %107
      %v111 = vlaneseq
      %v112 = vshrl.u32 %v111, 7
      %v113 = vsub.s32 0, %v112
      %v114 = vrot.slane %v99, %v113
      %v116 = vadd.f32 %v103, %v114
      %v117 = vadd.f32 %v108, %v114
      %v118 = vmul.f32 %v91, 2.0
      %v119 = vmul.f32 %v94, 2.0
      %v120 = vsub.f32 %v116, %v118
      %v121 = vsub.f32 %v117, %v119
      %v122 = vmax.f32 %v120, 0.0
      %v123 = vmax.f32 %v121, 0.0
      %s124 = smul.u32 0, 16
      %v125 = vlaneseq
      %v126 = vshrl.u32 %v125, 7
      %v127 = vadd.s32 %v126, 8
      %v128 = vstv %s124
      %v129 = vadd.s32 %v128, %v126
      %v130 = vadd.s32 %v128, %v127
      %v131 = vlaneseq
      %v132 = vand.u32 %v131, 127
      %p133 = por %p25, %p33
      %s134 = scalar_select %p133, 0, 16
      %v135 = vstv %s134
      %v136 = vadd.s32 %v132, %v135
      %vm137 = vcmp.lt.s32.totalorder %v129, %v136
      %vm138 = vcmp.lt.s32.totalorder %v130, %v136
      %vm139 = vcmp.lt.s32.totalorder %v129, 8
      %vm140 = vcmp.lt.s32.totalorder %v130, 8
      %vm141 = vcmp.lt.s32.totalorder %v132, 8
      %v142 = vsel %vm139, 1, 0
      %v143 = vsel %vm140, 1, 0
      %vm144 = vcmp.eq.s32.totalorder %v142, 1
      %vm145 = vcmp.eq.s32.totalorder %v143, 1
      %v146 = vsel %vm141, 1, 0
      %vm147 = vcmp.eq.s32.totalorder %v146, 1
      %vm148 = vmand %vm144, %vm147
      %vm149 = vmand %vm145, %vm147
      %vm150 = vmand %vm137, %vm148
      %vm151 = vmand %vm138, %vm149
      %v152 = vld [vmem:[%s4] sm:$0xff]
      %v153 = vld [vmem:[%s4 + $0x8] sm:$0xff]
      %v154 = vld [vmem:[%s5] sm:$0x1]
      %155 = vset.pattern.permute.xlu0 0
      %156 = vperm.xlu0 %155, %v152
      %v157 = vpop.permute.xlu0 %156
      %158 = vset.pattern.permute.xlu0 0
      %159 = vperm.xlu0 %158, %v153
      %v160 = vpop.permute.xlu0 %159
      %v161 = vlaneseq
      %v162 = vshrl.u32 %v161, 7
      %v163 = vsub.s32 0, %v162
      %v164 = vrot.slane %v154, %v163
      %vm165 = vcmp.eq.s32.totalorder %v157, %v164
      %vm166 = vcmp.eq.s32.totalorder %v160, %v164
      %v167 = vrsqrt.pop %v122
      %v168 = vmul.f32 %v122, %v167
      %vm169 = vcmp.eq.f32.partialorder %v122, inf
      %v170 = vsel %vm169, %v122, %v168
      %vm171 = vcmp.eq.f32.partialorder %v122, 0.0
      %v172 = vand.u32 %v122, 2147483648
      %v173 = vsel %vm171, %v172, %v170
      %v174 = vrsqrt.pop %v123
      %v175 = vmul.f32 %v123, %v174
      %vm176 = vcmp.eq.f32.partialorder %v123, inf
      %v177 = vsel %vm176, %v123, %v175
      %vm178 = vcmp.eq.f32.partialorder %v123, 0.0
      %v179 = vand.u32 %v123, 2147483648
      %v180 = vsel %vm178, %v179, %v177
      %v181 = vsub.f32 1.0, %v173
      %v182 = vsub.f32 1.0, %v180
      %v183 = vmax.f32 %v181, 0.0
      %v184 = vmax.f32 %v182, 0.0
      %v185 = vmul.f32 %v183, %v183
      %v186 = vmul.f32 %v184, %v184
      %v187 = vsel %vm165, %v122, %v185
      %v188 = vsel %vm166, %v123, %v186
      %v189 = vsel %vm150, %v187, 0.0
      %v190 = vsel %vm151, %v188, 0.0
      %v191 = vld [vmem:[#allocation2] sm:$0xff]
      %v192 = vld [vmem:[#allocation2 + $0x8] sm:$0xff]
      %v193 = vadd.f32 %v191, %v189
      %v194 = vadd.f32 %v192, %v190
      %vm195 = vcmask 130048
      %196 = vst.msk [vmem:[#allocation2] sm:$0xff] %vm195, %v193
      %197 = vst.msk [vmem:[#allocation2 + $0x8] sm:$0xff] %vm195, %v194
    $region33: #{tpu_custom_call.1} parent=1 // pred_fallthru
      _
    // Predicated region
    $region34: #{tpu_custom_call.1} parent=1 // pred_check
      _
    $region35: #{tpu_custom_call.1} parent=1 // pred_check_branch
      %199 = sbr.rel (0) target = $region37
    $region36: #{tpu_custom_call.1} parent=1 // pred_region
      %s201 = ssub.s32 256, 256
      %202 = vsyncadd [#allocation3], %s201
      %s203 = sshll.u32 [#allocation2], 4
      %s204 = int_to_ptr.vmem [resolvable:$true] %s203
      %209 = dma.vmem_to_hbm [thread:$0]  %s204, 256, %s6, [#allocation3], 128, 128, 8
    $region37: #{tpu_custom_call.1} parent=1 // pred_fallthru
      _
    // Predicated region
    $region38: #{tpu_custom_call.1} parent=1 // pred_check
      _
    $region39: #{tpu_custom_call.1} parent=1 // pred_check_branch
      %211 = sbr.rel (0) target = $region41
    $region40: #{tpu_custom_call.1} parent=1 // pred_region
      %212 = dma.done [#allocation3], 256
    $region41: #{tpu_custom_call.1} parent=1 // pred_fallthru
      _
    %213 = vsyncpa [#allocation3], 1

</llo_original>
